<compile_context>
chip_gen: v5e
topology: v5e:2x2
jax: 0.10.0
libtpu: 0.0.40
codegen_flags: <defaults>
</compile_context>

<pallas_src>
import functools

import jax
import jax.numpy as jnp
from jax.experimental import pallas as pl
from jax.experimental.pallas import tpu as pltpu

LANES = 128
TARGET_TILE_ROWS = 1024  # ~512 KiB per f32 input block; plateau of the HBM roofline


def _round_up(x, m):
    return ((x + m - 1) // m) * m


def _cdiv(a, b):
    return (a + b - 1) // b


def _l1_partial_kernel(pred_ref, label_ref, out_ref, acc_ref, *,
                       rows, tile_rows, tiles_per_core, needs_mask):
    c = pl.program_id(0)   # "parallel" axis (core split)
    i = pl.program_id(1)   # "arbitrary" reduction axis

    @pl.when(i == 0)
    def _():
        acc_ref[...] = jnp.zeros_like(acc_ref)

    diff = jnp.abs(pred_ref[...].astype(jnp.float32)
                   - label_ref[...].astype(jnp.float32))

    if needs_mask:  # static python bool: only emitted when a partial tile exists
        row_start = (c * tiles_per_core + i) * tile_rows
        row_ids = row_start + jax.lax.broadcasted_iota(jnp.int32, diff.shape, 0)
        diff = jnp.where(row_ids < rows, diff, 0.0)

    # Pure VPU elementwise accumulate; no per-step cross-lane reduce.
    acc_ref[...] += diff

    @pl.when(i == pl.num_programs(1) - 1)
    def _():
        # Single cross-lane/sublane reduce per core, broadcast into the out block.
        out_ref[...] = jnp.full(out_ref.shape, jnp.sum(acc_ref[...]),
                                dtype=out_ref.dtype)


def global_loss(pred, label):
    """Equivalent of GlobalLoss.forward: mean(|pred - label|)."""
    assert pred.shape == label.shape
    n_elems = pred.size

    pred_flat = pred.reshape(-1)
    label_flat = label.reshape(-1)

    # Sub-lane tail (< 128 elements) handled in plain JAX (tiny; avoids any
    # full-tensor pad/copy).  For lane-divisible sizes there is zero extra copy.
    bulk_elems = (n_elems // LANES) * LANES
    if bulk_elems < n_elems:
        tail_sum = jnp.sum(jnp.abs(
            pred_flat[bulk_elems:].astype(jnp.float32)
            - label_flat[bulk_elems:].astype(jnp.float32)))
    else:
        tail_sum = jnp.float32(0.0)

    if bulk_elems == 0:
        total = tail_sum
    else:
        rows = bulk_elems // LANES
        pred2d = pred_flat[:bulk_elems].reshape(rows, LANES)
        label2d = label_flat[:bulk_elems].reshape(rows, LANES)

        tile_rows = min(TARGET_TILE_ROWS, _round_up(rows, 8))
        num_tiles = _cdiv(rows, tile_rows)
        # Split across 2 TensorCores when there is enough work (v7x megacore);
        # harmless (serial outer loop) on single-TC chips.
        n_split = 2 if num_tiles >= 2 else 1
        tiles_per_core = _cdiv(num_tiles, n_split)
        needs_mask = (n_split * tiles_per_core * tile_rows) != rows

        kernel = functools.partial(
            _l1_partial_kernel,
            rows=rows, tile_rows=tile_rows,
            tiles_per_core=tiles_per_core, needs_mask=needs_mask)

        def in_map(c, i):
            t = c * tiles_per_core + i
            # Clamp over-shoot tiles (odd tile count); their rows are masked to 0
            # inside the kernel.
            return (jnp.minimum(t, num_tiles - 1), 0)

        partials = pl.pallas_call(
            kernel,
            out_shape=jax.ShapeDtypeStruct((n_split * 8, LANES), jnp.float32),
            grid_spec=pltpu.PrefetchScalarGridSpec(
                num_scalar_prefetch=0,
                grid=(n_split, tiles_per_core),
                in_specs=[
                    pl.BlockSpec((tile_rows, LANES), in_map),
                    pl.BlockSpec((tile_rows, LANES), in_map),
                ],
                out_specs=pl.BlockSpec((8, LANES), lambda c, i: (c, 0)),
                scratch_shapes=[pltpu.VMEM((tile_rows, LANES), jnp.float32)],
            ),
            compiler_params=pltpu.CompilerParams(
                dimension_semantics=("parallel", "arbitrary"),
            ),
        )(pred2d, label2d)

        # Each core's (8,128) out block is filled with its partial sum.
        per_core = partials.reshape(n_split, 8 * LANES)[:, 0]
        total = jnp.sum(per_core) + tail_sum

    return (total / jnp.float32(n_elems)).astype(pred.dtype)


if __name__ == "__main__":
    key = jax.random.PRNGKey(0)
    k1, k2 = jax.random.split(key)
    # GlobalLoss has no fixed input shape; use an image-like NCHW tensor.
    pred = jax.random.normal(k1, (2, 4, 16, 16), dtype=jnp.float32)
    label = jax.random.normal(k2, (2, 4, 16, 16), dtype=jnp.float32)

    loss = global_loss(pred, label)
    jax.block_until_ready(loss)

    # Sanity check against pure-JAX reference.
    ref = jnp.mean(jnp.abs(pred - label))
    assert jnp.allclose(loss, ref, atol=1e-6, rtol=1e-6), (loss, ref)

    print("KERNEL_OK")
</pallas_src>

<mosaic_0001>
module attributes {stable_mosaic.version = 11 : i64} {
  func.func @_l1_partial_kernel(%arg0: i32, %arg1: i32, %arg2: memref<16x128xf32, #tpu.memory_space<vmem>>, %arg3: memref<16x128xf32, #tpu.memory_space<vmem>>, %arg4: memref<8x128xf32, #tpu.memory_space<vmem>>, %arg5: memref<16x128xf32, #tpu.memory_space<vmem>>) attributes {dimension_semantics = [#tpu.dimension_semantics<parallel>, #tpu.dimension_semantics<arbitrary>], iteration_bounds = array<i64: 1, 1>, scalar_prefetch = 0 : i64, scratch_operands = 1 : i64, tpu.core_type = #tpu.core_type<tc>, window_params = [{transform_indices = @transform_0, window_bounds = array<i64: 16, 128>}, {transform_indices = @transform_1, window_bounds = array<i64: 16, 128>}, {transform_indices = @transform_2, window_bounds = array<i64: 8, 128>}]} {
    %c0_i32 = arith.constant 0 : i32
    %0 = arith.cmpi eq, %arg1, %c0_i32 : i32
    %1 = arith.extui %0 : i1 to i32
    %c0_i32_0 = arith.constant 0 : i32
    %2 = arith.cmpi ne, %1, %c0_i32_0 : i32
    scf.if %2 {
      %cst = arith.constant 0.000000e+00 : f32
      %13 = vector.broadcast %cst : f32 to vector<16x128xf32>
      %c0_10 = arith.constant 0 : index
      %c0_11 = arith.constant 0 : index
      %14 = vector.load %arg5[%c0_10, %c0_11] : memref<16x128xf32, #tpu.memory_space<vmem>>, vector<16x128xf32>
      tpu.vector_store %arg5[%c0_10, %c0_11], %13 {strides = array<i32>} : memref<16x128xf32, #tpu.memory_space<vmem>>, vector<16x128xf32>,
    } else {
    }
    %c0 = arith.constant 0 : index
    %c0_1 = arith.constant 0 : index
    %3 = vector.load %arg2[%c0, %c0_1] : memref<16x128xf32, #tpu.memory_space<vmem>>, vector<16x128xf32>
    %c0_2 = arith.constant 0 : index
    %c0_3 = arith.constant 0 : index
    %4 = vector.load %arg3[%c0_2, %c0_3] : memref<16x128xf32, #tpu.memory_space<vmem>>, vector<16x128xf32>
    %5 = arith.subf %3, %4 : vector<16x128xf32>
    %6 = math.absf %5 : vector<16x128xf32>
    %c0_4 = arith.constant 0 : index
    %c0_5 = arith.constant 0 : index
    %7 = vector.load %arg5[%c0_4, %c0_5] : memref<16x128xf32, #tpu.memory_space<vmem>>, vector<16x128xf32>
    %8 = arith.addf %7, %6 : vector<16x128xf32>
    %c0_6 = arith.constant 0 : index
    %c0_7 = arith.constant 0 : index
    %9 = vector.load %arg5[%c0_6, %c0_7] : memref<16x128xf32, #tpu.memory_space<vmem>>, vector<16x128xf32>
    tpu.vector_store %arg5[%c0_6, %c0_7], %8 {strides = array<i32>} : memref<16x128xf32, #tpu.memory_space<vmem>>, vector<16x128xf32>,
    %c0_i32_8 = arith.constant 0 : i32
    %10 = arith.cmpi eq, %arg1, %c0_i32_8 : i32
    %11 = arith.extui %10 : i1 to i32
    %c0_i32_9 = arith.constant 0 : i32
    %12 = arith.cmpi ne, %11, %c0_i32_9 : i32
    scf.if %12 {
      %c0_10 = arith.constant 0 : index
      %c0_11 = arith.constant 0 : index
      %13 = vector.load %arg5[%c0_10, %c0_11] : memref<16x128xf32, #tpu.memory_space<vmem>>, vector<16x128xf32>
      %14 = vector.shape_cast %13 : vector<16x128xf32> to vector<1x16x128xf32>
      %cst = arith.constant dense<0.000000e+00> : vector<1xf32>
      %15 = vector.multi_reduction <add>, %14, %cst [1, 2] : vector<1x16x128xf32> to vector<1xf32>
      %16 = vector.shape_cast %15 : vector<1xf32> to vector<1x1x1xf32>
      %17 = vector.extract %16[0, 0, 0] : f32 from vector<1x1x1xf32>
      %18 = vector.broadcast %17 : f32 to vector<8x128xf32>
      %c0_12 = arith.constant 0 : index
      %c0_13 = arith.constant 0 : index
      %19 = vector.load %arg4[%c0_12, %c0_13] : memref<8x128xf32, #tpu.memory_space<vmem>>, vector<8x128xf32>
      tpu.vector_store %arg4[%c0_12, %c0_13], %18 {strides = array<i32>} : memref<8x128xf32, #tpu.memory_space<vmem>>, vector<8x128xf32>,
    } else {
    }
    return
  }
  func.func @transform_0(%arg0: i32, %arg1: i32) -> (i32, i32) {
    %c1_i32 = arith.constant 1 : i32
    %0 = arith.muli %arg0, %c1_i32 : i32
    %1 = arith.addi %0, %arg1 : i32
    %c0_i32 = arith.constant 0 : i32
    %2 = arith.minsi %1, %c0_i32 : i32
    %c0_i32_0 = arith.constant 0 : i32
    %c0_i32_1 = arith.constant 0 : i32
    return %2, %c0_i32_0 : i32, i32
  }
  func.func @transform_1(%arg0: i32, %arg1: i32) -> (i32, i32) {
    %c1_i32 = arith.constant 1 : i32
    %0 = arith.muli %arg0, %c1_i32 : i32
    %1 = arith.addi %0, %arg1 : i32
    %c0_i32 = arith.constant 0 : i32
    %2 = arith.minsi %1, %c0_i32 : i32
    %c0_i32_0 = arith.constant 0 : i32
    %c0_i32_1 = arith.constant 0 : i32
    return %2, %c0_i32_0 : i32, i32
  }
  func.func @transform_2(%arg0: i32, %arg1: i32) -> (i32, i32) {
    %c0_i32 = arith.constant 0 : i32
    %c0_i32_0 = arith.constant 0 : i32
    return %arg0, %c0_i32 : i32, i32
  }
}

</mosaic_0001>

<llo_original>
// kernel: tpu_custom_call.1
$region0: #{tpu_custom_call.1}
  #allocation0 [shape = 'u32[]', space=smem, size = 0x4, offset = 0x4, fixed_abs, tag = 'smem constant byte address 0x4 - core index']
  #allocation1 [shape = 'u32[72,128]{1,0:T(1,128)}', space=vmem, size = 0x9000, scoped, tag = 'internal scratch']
  #allocation2 [shape = 'f32[16,128]{1,0:T(8,128)}', space=vmem, size = 0x2000, scoped, tag = 'scratch operand']
  %s0 = inlined_call_operand.hbm [shape: f32[16,128], index: 0, kind: input, shape index: {}]
  %s1 = inlined_call_operand.hbm [shape: f32[16,128], index: 1, kind: input, shape index: {}]
  %s2 = inlined_call_operand.hbm [shape: f32[8,128], index: 2, kind: output, shape index: {}]
  %s3 = sld [smem:[#allocation0]]
  $region34: #{tpu_custom_call.1} parent=0
    _
  %s5 = ssub.s32 1, %s3
  %s6 = scalar_select 0, %s5, %s3
  $region1: #{tpu_custom_call.1} parent=0
    #allocation3 [shape = 'u8[8192]{0}', space=vmem, size = 0x2000, scoped, tag = 'input window, operand 0, single buffered']
    #allocation4 [shape = 's32[1]{0}', space=sflag, size = 0x4, scoped, tag = 'scoped memory for tpu_custom_call.1']
    #allocation5 [shape = 's32[1]{0}', space=sflag, size = 0x4, scoped, tag = 'scoped memory for tpu_custom_call.1']
    #allocation6 [shape = 'u8[8192]{0}', space=vmem, size = 0x2000, scoped, tag = 'input window, operand 1, single buffered']
    #allocation7 [shape = 's32[1]{0}', space=sflag, size = 0x4, scoped, tag = 'scoped memory for tpu_custom_call.1']
    #allocation8 [shape = 'u8[4096]{0}', space=vmem, size = 0x1000, scoped, tag = 'output window, operand 0, single buffered']
    %7 = vsyncpa [#allocation4], 0
    %8 = vsyncpa [#allocation7], 0
    %9 = vsyncpa [#allocation5], 0
    // Predicated region
    $region2: #{tpu_custom_call.1} parent=1 // pred_check
      _
    $region3: #{tpu_custom_call.1} parent=1 // pred_check_branch
      %11 = sbr.rel (0) target = $region5
    $region4: #{tpu_custom_call.1} parent=1 // pred_region
      %s12 = sadd.s32 0, 0
      %p13 = scmp.lt.s32.totalorder %s12, 0
      %s14 = scalar_select %p13, %s12, 0
      %s15 = smul.u32 2, %s14
      %17 = vsyncadd [#allocation4], 0
      %s18 = smul.addr %s15, 8
      %s19 = scalar_lea.hbm %s0, %s18
      %s20 = sshll.u32 %s19, 4
      %s21 = int_to_ptr.hbm [resolvable:$true] %s20
      %s22 = sshll.u32 [#allocation3], 4
      %s23 = int_to_ptr.vmem [resolvable:$true] %s22
      %28 = dma.hbm_to_vmem [thread:$0]  %s21, 256, %s23, [#allocation4], 128, 128, 8
    $region5: #{tpu_custom_call.1} parent=1 // pred_fallthru
      _
    // Predicated region
    $region6: #{tpu_custom_call.1} parent=1 // pred_check
      _
    $region7: #{tpu_custom_call.1} parent=1 // pred_check_branch
      %30 = sbr.rel (0) target = $region9
    $region8: #{tpu_custom_call.1} parent=1 // pred_region
      %s31 = sadd.s32 0, 0
      %p32 = scmp.lt.s32.totalorder %s31, 0
      %s33 = scalar_select %p32, %s31, 0
      %s34 = smul.u32 2, %s33
      %36 = vsyncadd [#allocation7], 0
      %s37 = smul.addr %s34, 8
      %s38 = scalar_lea.hbm %s1, %s37
      %s39 = sshll.u32 %s38, 4
      %s40 = int_to_ptr.hbm [resolvable:$true] %s39
      %s41 = sshll.u32 [#allocation6], 4
      %s42 = int_to_ptr.vmem [resolvable:$true] %s41
      %47 = dma.hbm_to_vmem [thread:$0]  %s40, 256, %s42, [#allocation7], 128, 128, 8
    $region9: #{tpu_custom_call.1} parent=1 // pred_fallthru
      _
    // Predicated region
    $region10: #{tpu_custom_call.1} parent=1 // pred_check
      _
    $region11: #{tpu_custom_call.1} parent=1 // pred_check_branch
      %49 = sbr.rel (0) target = $region13
    $region12: #{tpu_custom_call.1} parent=1 // pred_region
      %51 = dma.done [#allocation4], 256
    $region13: #{tpu_custom_call.1} parent=1 // pred_fallthru
      _
    // Predicated region
    $region14: #{tpu_custom_call.1} parent=1 // pred_check
      _
    $region15: #{tpu_custom_call.1} parent=1 // pred_check_branch
      %53 = sbr.rel (0) target = $region17
    $region16: #{tpu_custom_call.1} parent=1 // pred_region
      %55 = dma.done [#allocation7], 256
    $region17: #{tpu_custom_call.1} parent=1 // pred_fallthru
      _
    %s56 = sadd.s32 0, 0
    %p57 = scmp.lt.s32.totalorder %s56, 0
    %s58 = scalar_select %p57, %s56, 0
    %s59 = smul.u32 2, %s58
    %s60 = sadd.s32 0, 0
    %p61 = scmp.lt.s32.totalorder %s60, 0
    %s62 = scalar_select %p61, %s60, 0
    %s63 = smul.u32 2, %s62
    %p64 = scmp.eq.s32.totalorder 0, 0
    // Predicated region
    $region18: #{tpu_custom_call.1} parent=1 // pred_check
      %p65 = pneg %p64
    $region19: #{tpu_custom_call.1} parent=1 // pred_check_branch
      %67 = sbr.rel (%p65) target = $region21
    $region20: #{tpu_custom_call.1} parent=1 // pred_region
      %68 = vst [vmem:[#allocation2] sm:$0xff] 0.0
      %69 = vst [vmem:[#allocation2 + $0x8] sm:$0xff] 0.0
    $region21: #{tpu_custom_call.1} parent=1 // pred_fallthru
      _
    %v70 = vld [vmem:[#allocation3] sm:$0xff]
    %v71 = vld [vmem:[#allocation3 + $0x8] sm:$0xff]
    %v72 = vld [vmem:[#allocation6] sm:$0xff]
    %v73 = vld [vmem:[#allocation6 + $0x8] sm:$0xff]
    %v74 = vsub.f32 %v70, %v72
    %v75 = vsub.f32 %v71, %v73
    %v76 = vand.u32 2147483647, %v74
    %v77 = vand.u32 2147483647, %v75
    %v78 = vld [vmem:[#allocation2] sm:$0xff]
    %v79 = vld [vmem:[#allocation2 + $0x8] sm:$0xff]
    %v80 = vadd.f32 %v78, %v76
    %v81 = vadd.f32 %v79, %v77
    %82 = vst [vmem:[#allocation2] sm:$0xff] %v80
    %83 = vst [vmem:[#allocation2 + $0x8] sm:$0xff] %v81
    // Predicated region
    $region22: #{tpu_custom_call.1} parent=1 // pred_check
      %p84 = pneg %p64
    $region23: #{tpu_custom_call.1} parent=1 // pred_check_branch
      %86 = sbr.rel (%p84) target = $region25
    $region24: #{tpu_custom_call.1} parent=1 // pred_region
      %v87 = vld [vmem:[#allocation2] sm:$0xff]
      %v88 = vld [vmem:[#allocation2 + $0x8] sm:$0xff]
      %v89 = vadd.f32 %v87, %v88
      %90 = vadd.xlane.f32.xlu0 %v89
      %v91 = vpop.xlane.xlu0 %90
      %v92 = vrot.slane %v91, 4
      %v93 = vadd.f32 %v91, %v92
      %v94 = vrot.slane %v93, 2
      %v95 = vadd.f32 %v93, %v94
      %v96 = vrot.slane %v95, 1
      %v97 = vadd.f32 %v95, %v96
      %s98 = vtos %v97
      %v99 = vstv %s98
      %100 = vst [vmem:[#allocation8] sm:$0xff] %v99
    $region25: #{tpu_custom_call.1} parent=1 // pred_fallthru
      _
    // Predicated region
    $region26: #{tpu_custom_call.1} parent=1 // pred_check
      _
    $region27: #{tpu_custom_call.1} parent=1 // pred_check_branch
      %102 = sbr.rel (0) target = $region29
    $region28: #{tpu_custom_call.1} parent=1 // pred_region
      %104 = vsyncadd [#allocation5], 0
      %s106 = sshll.u32 [#allocation8], 4
      %s107 = int_to_ptr.vmem [resolvable:$true] %s106
      %s108 = sshll.u32 %s2, 4
      %s109 = int_to_ptr.hbm [resolvable:$true] %s108
      %111 = dma.vmem_to_hbm [thread:$0]  %s107, 128, %s109, [#allocation5]
    $region29: #{tpu_custom_call.1} parent=1 // pred_fallthru
      _
    // Predicated region
    $region30: #{tpu_custom_call.1} parent=1 // pred_check
      _
    $region31: #{tpu_custom_call.1} parent=1 // pred_check_branch
      %113 = sbr.rel (0) target = $region33
    $region32: #{tpu_custom_call.1} parent=1 // pred_region
      %115 = dma.done [#allocation5], 128
    $region33: #{tpu_custom_call.1} parent=1 // pred_fallthru
      _
    %116 = vsyncpa [#allocation4], 1
    %117 = vsyncpa [#allocation7], 1
    %118 = vsyncpa [#allocation5], 1

</llo_original>
